<compile_context>
chip_gen: v5e
topology: v5e:2x2
jax: 0.10.0
libtpu: 0.0.40
codegen_flags: <defaults>
</compile_context>

<pallas_src>
import math

import jax
import jax.numpy as jnp
from jax.experimental import pallas as pl
from jax.experimental.pallas import tpu as pltpu

OUT_PAD = 128  # packed output slab lanes: [0:A)=mean, [A:2A)=act, [2A]=val, rest 0


def _actor_critic_kernel(
    obs_ref, noise_ref, log_std_ref,
    w1_ref, b1_ref, w2_ref, b2_ref, w3_ref, b3_ref, place_ref,
    out_ref,
):
    # Fused actor+critic MLP: bf16 MXU inputs, f32 accumulation, f32 elementwise.
    x = obs_ref[...].astype(jnp.bfloat16)
    h = jnp.tanh(
        jnp.dot(x, w1_ref[...], preferred_element_type=jnp.float32) + b1_ref[...]
    )
    h = jnp.tanh(
        jnp.dot(h.astype(jnp.bfloat16), w2_ref[...],
                preferred_element_type=jnp.float32) + b2_ref[...]
    )
    # head lanes: [0:A)=mean, [A:2A)=mean (duplicated columns), [2A]=val, rest = 0.
    head = (
        jnp.dot(h.astype(jnp.bfloat16), w3_ref[...],
                preferred_element_type=jnp.float32) + b3_ref[...]
    )

    # Gaussian policy head: act = mean + exp(log_std) * noise.  std*noise is
    # scattered into the act lanes [A, 2A) via a constant 0/1 placement matmul so
    # the whole (B_tile, 128) slab is written with one unmasked, lane-dense store.
    sn = jnp.exp(log_std_ref[...]) * noise_ref[...]                    # (bt, A) f32
    sn_slab = jnp.dot(sn, place_ref[...], preferred_element_type=jnp.float32)

    out_ref[...] = head + sn_slab


def _round_up(x, m):
    return (x + m - 1) // m * m


def actor_critic_forward(obs, noise, packed, *, block_b=512):
    """Full ActorCritic.forward in one gridded Pallas call.

    obs:   (B, obs_dim) float32
    noise: (B, act_dim) float32 standard-normal samples
    packed: dict from pack_params()
    Returns (val, act, mean) matching the PyTorch module.
    """
    B, obs_dim = obs.shape
    A = noise.shape[1]
    out_pad = packed["w3"].shape[1]
    h1c = packed["w1"].shape[1]          # 2 * hidden_sizes[0]
    h2c = packed["w2"].shape[1]          # 2 * hidden_sizes[1]

    bt = min(_round_up(block_b, 8), _round_up(B, 8))
    Bp = _round_up(B, bt)
    if Bp != B:  # pad batch so the grid tiles evenly; padded rows are sliced away
        obs = jnp.pad(obs, ((0, Bp - B), (0, 0)))
        noise = jnp.pad(noise, ((0, Bp - B), (0, 0)))
    grid = (Bp // bt,)

    def batch_map(i):
        return (i, 0)

    def const_map(i):
        return (0, 0)

    in_specs = [
        pl.BlockSpec((bt, obs_dim), batch_map),        # obs: streamed over batch
        pl.BlockSpec((bt, A), batch_map),              # noise: streamed over batch
        pl.BlockSpec(packed["log_std"].shape, const_map),
        pl.BlockSpec(packed["w1"].shape, const_map),   # params: VMEM-resident
        pl.BlockSpec(packed["b1"].shape, const_map),
        pl.BlockSpec(packed["w2"].shape, const_map),
        pl.BlockSpec(packed["b2"].shape, const_map),
        pl.BlockSpec(packed["w3"].shape, const_map),
        pl.BlockSpec(packed["b3"].shape, const_map),
        pl.BlockSpec(packed["place"].shape, const_map),
    ]
    out_specs = pl.BlockSpec((bt, out_pad), batch_map)

    flops = 2 * Bp * (obs_dim * h1c + h1c * h2c + h2c * out_pad + A * out_pad)
    transcendentals = Bp * (h1c + h2c) + A
    param_bytes = sum(int(v.size) * v.dtype.itemsize for v in packed.values())
    bytes_accessed = (int(obs.size) + int(noise.size) + Bp * out_pad) * 4 + param_bytes

    out = pl.pallas_call(
        _actor_critic_kernel,
        out_shape=jax.ShapeDtypeStruct((Bp, out_pad), jnp.float32),
        grid=grid,
        in_specs=in_specs,
        out_specs=out_specs,
        compiler_params=pltpu.CompilerParams(
            dimension_semantics=("parallel",),   # megacore-shard the batch axis
        ),
        cost_estimate=pl.CostEstimate(
            flops=flops,
            transcendentals=transcendentals,
            bytes_accessed=bytes_accessed,
        ),
    )(
        obs, noise, packed["log_std"],
        packed["w1"], packed["b1"], packed["w2"], packed["b2"],
        packed["w3"], packed["b3"], packed["place"],
    )

    mean = out[:B, 0:A]
    act = out[:B, A:2 * A]
    val = out[:B, 2 * A:2 * A + 1]
    return val, act, mean


def make_params(key, obs_dim, act_dim, hidden_sizes):
    """Mirrors the module's __init__: xavier_normal_(gain=0.1) weights, zero biases,
    zero log_std.  Weights stored (in_features, out_features) for x @ W."""
    h1, h2 = hidden_sizes
    dims = [
        ("aw1", obs_dim, h1), ("aw2", h1, h2), ("aw3", h2, act_dim),
        ("cw1", obs_dim, h1), ("cw2", h1, h2), ("cw3", h2, 1),
    ]
    params = {}
    keys = jax.random.split(key, len(dims))
    gain = 0.1
    for k, (name, fan_in, fan_out) in zip(keys, dims):
        std = gain * math.sqrt(2.0 / (fan_in + fan_out))  # xavier_normal_
        params[name] = (std * jax.random.normal(k, (fan_in, fan_out))).astype(jnp.float32)
        bname = ("ab" if name[0] == "a" else "cb") + name[2]
        params[bname] = jnp.zeros((1, fan_out), jnp.float32)
    params["log_std"] = jnp.zeros((1, act_dim), jnp.float32)
    return params


def pack_params(params, act_dim, out_pad=OUT_PAD):
    """Fuse actor+critic params into one MLP and pack the heads lane-densely."""
    h1 = params["aw1"].shape[1]
    h2 = params["aw2"].shape[1]
    A = act_dim
    assert out_pad >= 2 * A + 1

    w1 = jnp.concatenate([params["aw1"], params["cw1"]], axis=1)        # (obs, 2h1)
    b1 = jnp.concatenate([params["ab1"], params["cb1"]], axis=1)        # (1, 2h1)

    w2 = jnp.zeros((2 * h1, 2 * h2), jnp.float32)                       # block-diag
    w2 = w2.at[:h1, :h2].set(params["aw2"])
    w2 = w2.at[h1:, h2:].set(params["cw2"])
    b2 = jnp.concatenate([params["ab2"], params["cb2"]], axis=1)        # (1, 2h2)

    w3 = jnp.zeros((2 * h2, out_pad), jnp.float32)                      # packed head
    w3 = w3.at[:h2, 0:A].set(params["aw3"])                             # mean lanes
    w3 = w3.at[:h2, A:2 * A].set(params["aw3"])                         # act lanes (mean copy)
    w3 = w3.at[h2:, 2 * A].set(params["cw3"][:, 0])                     # val lane
    b3 = jnp.zeros((1, out_pad), jnp.float32)
    b3 = b3.at[:, 0:A].set(params["ab3"])
    b3 = b3.at[:, A:2 * A].set(params["ab3"])
    b3 = b3.at[:, 2 * A].set(params["cb3"][0, 0])

    # 0/1 lane-placement matrix: scatters (std * noise) into the act lanes [A, 2A).
    place = jnp.zeros((A, out_pad), jnp.float32)
    place = place.at[jnp.arange(A), A + jnp.arange(A)].set(1.0)

    return {
        "w1": w1.astype(jnp.bfloat16), "b1": b1,
        "w2": w2.astype(jnp.bfloat16), "b2": b2,
        "w3": w3.astype(jnp.bfloat16), "b3": b3,
        "log_std": params["log_std"], "place": place,
    }


if __name__ == "__main__":
    # Small shapes consistent with the module: obs -> 2x32 MLP -> act/val.
    B, obs_dim, act_dim = 20, 16, 4
    hidden_sizes = (32, 32)

    root = jax.random.PRNGKey(0)
    k_param, k_obs, k_noise = jax.random.split(root, 3)

    params = make_params(k_param, obs_dim, act_dim, hidden_sizes)
    packed = pack_params(params, act_dim)

    obs = jax.random.normal(k_obs, (B, obs_dim), dtype=jnp.float32)
    # torch.normal(mean, std): standard-normal noise drawn outside, combined in-kernel.
    noise = jax.random.normal(k_noise, (B, act_dim), dtype=jnp.float32)

    # block_b=8 exercises a multi-step batch grid here (B=20 -> padded 24 -> 3 tiles).
    val, act, mean = actor_critic_forward(obs, noise, packed, block_b=8)
    jax.block_until_ready((val, act, mean))

    # --- reference 1: identical math (bf16 matmul inputs, f32 accumulate) ---
    def ref_packed(obs, noise, pp, A):
        x = obs.astype(jnp.bfloat16)
        h = jnp.tanh(jnp.dot(x, pp["w1"], preferred_element_type=jnp.float32) + pp["b1"])
        h = jnp.tanh(jnp.dot(h.astype(jnp.bfloat16), pp["w2"],
                             preferred_element_type=jnp.float32) + pp["b2"])
        head = jnp.dot(h.astype(jnp.bfloat16), pp["w3"],
                       preferred_element_type=jnp.float32) + pp["b3"]
        mean_r = head[:, 0:A]
        val_r = head[:, 2 * A:2 * A + 1]
        act_r = mean_r + jnp.exp(pp["log_std"]) * noise
        return val_r, act_r, mean_r

    val_r, act_r, mean_r = ref_packed(obs, noise, packed, act_dim)
    assert jnp.allclose(val, val_r, atol=1e-4, rtol=1e-2)
    assert jnp.allclose(act, act_r, atol=1e-4, rtol=1e-2)
    assert jnp.allclose(mean, mean_r, atol=1e-4, rtol=1e-2)

    # --- reference 2: pure-f32 semantics of the original PyTorch module ---
    def ref_f32(obs, noise, p):
        x = jnp.tanh(obs @ p["aw1"] + p["ab1"])
        x = jnp.tanh(x @ p["aw2"] + p["ab2"])
        mean_r = x @ p["aw3"] + p["ab3"]
        act_r = mean_r + jnp.exp(p["log_std"]) * noise
        v = jnp.tanh(obs @ p["cw1"] + p["cb1"])
        v = jnp.tanh(v @ p["cw2"] + p["cb2"])
        val_r = v @ p["cw3"] + p["cb3"]
        return val_r, act_r, mean_r

    val_f, act_f, mean_f = ref_f32(obs, noise, params)
    assert jnp.allclose(val, val_f, atol=2e-3, rtol=2e-2)   # bf16 weight quantization only
    assert jnp.allclose(act, act_f, atol=2e-3, rtol=2e-2)
    assert jnp.allclose(mean, mean_f, atol=2e-3, rtol=2e-2)

    assert val.shape == (B, 1) and act.shape == (B, act_dim) and mean.shape == (B, act_dim)
    print("KERNEL_OK")
</pallas_src>

<mosaic_0001>
module attributes {stable_mosaic.version = 11 : i64} {
  func.func @_actor_critic_kernel(%arg0: i32, %arg1: memref<8x16xf32, #tpu.memory_space<vmem>>, %arg2: memref<8x4xf32, #tpu.memory_space<vmem>>, %arg3: memref<1x4xf32, #tpu.memory_space<vmem>>, %arg4: memref<16x64xbf16, #tpu.memory_space<vmem>>, %arg5: memref<1x64xf32, #tpu.memory_space<vmem>>, %arg6: memref<64x64xbf16, #tpu.memory_space<vmem>>, %arg7: memref<1x64xf32, #tpu.memory_space<vmem>>, %arg8: memref<64x128xbf16, #tpu.memory_space<vmem>>, %arg9: memref<1x128xf32, #tpu.memory_space<vmem>>, %arg10: memref<4x128xf32, #tpu.memory_space<vmem>>, %arg11: memref<8x128xf32, #tpu.memory_space<vmem>>) attributes {dimension_semantics = [#tpu.dimension_semantics<parallel>], iteration_bounds = array<i64: 3>, scalar_prefetch = 0 : i64, scratch_operands = 0 : i64, tpu.core_type = #tpu.core_type<tc>, window_params = [{transform_indices = @transform_0, window_bounds = array<i64: 8, 16>}, {transform_indices = @transform_1, window_bounds = array<i64: 8, 4>}, {pipeline_mode = #tpu.pipeline_mode<synchronous>, transform_indices = @transform_2, window_bounds = array<i64: 1, 4>}, {pipeline_mode = #tpu.pipeline_mode<synchronous>, transform_indices = @transform_3, window_bounds = array<i64: 16, 64>}, {pipeline_mode = #tpu.pipeline_mode<synchronous>, transform_indices = @transform_4, window_bounds = array<i64: 1, 64>}, {pipeline_mode = #tpu.pipeline_mode<synchronous>, transform_indices = @transform_5, window_bounds = array<i64: 64, 64>}, {pipeline_mode = #tpu.pipeline_mode<synchronous>, transform_indices = @transform_6, window_bounds = array<i64: 1, 64>}, {pipeline_mode = #tpu.pipeline_mode<synchronous>, transform_indices = @transform_7, window_bounds = array<i64: 64, 128>}, {pipeline_mode = #tpu.pipeline_mode<synchronous>, transform_indices = @transform_8, window_bounds = array<i64: 1, 128>}, {pipeline_mode = #tpu.pipeline_mode<synchronous>, transform_indices = @transform_9, window_bounds = array<i64: 4, 128>}, {transform_indices = @transform_10, window_bounds = array<i64: 8, 128>}]} {
    %c0 = arith.constant 0 : index
    %c0_0 = arith.constant 0 : index
    %0 = vector.load %arg1[%c0, %c0_0] : memref<8x16xf32, #tpu.memory_space<vmem>>, vector<8x16xf32>
    %1 = arith.truncf %0 : vector<8x16xf32> to vector<8x16xbf16>
    %c0_1 = arith.constant 0 : index
    %c0_2 = arith.constant 0 : index
    %2 = vector.load %arg4[%c0_1, %c0_2] : memref<16x64xbf16, #tpu.memory_space<vmem>>, vector<16x64xbf16>
    %cst = arith.constant dense<0.000000e+00> : vector<8x64xf32>
    %3 = tpu.matmul %1, %2, %cst {dimension_numbers = #tpu.dot_dimension_numbers<[1], [0], [0], [1], [0, 0, 1, 1], [], []>} : vector<8x16xbf16>, vector<16x64xbf16>, vector<8x64xf32> -> vector<8x64xf32>
    %c0_3 = arith.constant 0 : index
    %c0_4 = arith.constant 0 : index
    %4 = vector.load %arg5[%c0_3, %c0_4] : memref<1x64xf32, #tpu.memory_space<vmem>>, vector<1x64xf32>
    %5 = vector.broadcast %4 : vector<1x64xf32> to vector<8x64xf32>
    %6 = arith.addf %3, %5 : vector<8x64xf32>
    %7 = math.tanh %6 : vector<8x64xf32>
    %8 = arith.truncf %7 : vector<8x64xf32> to vector<8x64xbf16>
    %c0_5 = arith.constant 0 : index
    %c0_6 = arith.constant 0 : index
    %9 = vector.load %arg6[%c0_5, %c0_6] : memref<64x64xbf16, #tpu.memory_space<vmem>>, vector<64x64xbf16>
    %cst_7 = arith.constant dense<0.000000e+00> : vector<8x64xf32>
    %10 = tpu.matmul %8, %9, %cst_7 {dimension_numbers = #tpu.dot_dimension_numbers<[1], [0], [0], [1], [0, 0, 1, 1], [], []>} : vector<8x64xbf16>, vector<64x64xbf16>, vector<8x64xf32> -> vector<8x64xf32>
    %c0_8 = arith.constant 0 : index
    %c0_9 = arith.constant 0 : index
    %11 = vector.load %arg7[%c0_8, %c0_9] : memref<1x64xf32, #tpu.memory_space<vmem>>, vector<1x64xf32>
    %12 = vector.broadcast %11 : vector<1x64xf32> to vector<8x64xf32>
    %13 = arith.addf %10, %12 : vector<8x64xf32>
    %14 = math.tanh %13 : vector<8x64xf32>
    %15 = arith.truncf %14 : vector<8x64xf32> to vector<8x64xbf16>
    %c0_10 = arith.constant 0 : index
    %c0_11 = arith.constant 0 : index
    %16 = vector.load %arg8[%c0_10, %c0_11] : memref<64x128xbf16, #tpu.memory_space<vmem>>, vector<64x128xbf16>
    %cst_12 = arith.constant dense<0.000000e+00> : vector<8x128xf32>
    %17 = tpu.matmul %15, %16, %cst_12 {dimension_numbers = #tpu.dot_dimension_numbers<[1], [0], [0], [1], [0, 0, 1, 1], [], []>} : vector<8x64xbf16>, vector<64x128xbf16>, vector<8x128xf32> -> vector<8x128xf32>
    %c0_13 = arith.constant 0 : index
    %c0_14 = arith.constant 0 : index
    %18 = vector.load %arg9[%c0_13, %c0_14] : memref<1x128xf32, #tpu.memory_space<vmem>>, vector<1x128xf32>
    %19 = vector.broadcast %18 : vector<1x128xf32> to vector<8x128xf32>
    %20 = arith.addf %17, %19 : vector<8x128xf32>
    %c0_15 = arith.constant 0 : index
    %c0_16 = arith.constant 0 : index
    %21 = vector.load %arg3[%c0_15, %c0_16] : memref<1x4xf32, #tpu.memory_space<vmem>>, vector<1x4xf32>
    %22 = math.exp %21 : vector<1x4xf32>
    %c0_17 = arith.constant 0 : index
    %c0_18 = arith.constant 0 : index
    %23 = vector.load %arg2[%c0_17, %c0_18] : memref<8x4xf32, #tpu.memory_space<vmem>>, vector<8x4xf32>
    %24 = vector.broadcast %22 : vector<1x4xf32> to vector<8x4xf32>
    %25 = arith.mulf %24, %23 : vector<8x4xf32>
    %c0_19 = arith.constant 0 : index
    %c0_20 = arith.constant 0 : index
    %26 = vector.load %arg10[%c0_19, %c0_20] : memref<4x128xf32, #tpu.memory_space<vmem>>, vector<4x128xf32>
    %cst_21 = arith.constant dense<0.000000e+00> : vector<8x128xf32>
    %27 = tpu.matmul %25, %26, %cst_21 {dimension_numbers = #tpu.dot_dimension_numbers<[1], [0], [0], [1], [0, 0, 1, 1], [], []>} : vector<8x4xf32>, vector<4x128xf32>, vector<8x128xf32> -> vector<8x128xf32>
    %28 = arith.addf %20, %27 : vector<8x128xf32>
    %c0_22 = arith.constant 0 : index
    %c0_23 = arith.constant 0 : index
    %29 = vector.load %arg11[%c0_22, %c0_23] : memref<8x128xf32, #tpu.memory_space<vmem>>, vector<8x128xf32>
    tpu.vector_store %arg11[%c0_22, %c0_23], %28 {strides = array<i32>} : memref<8x128xf32, #tpu.memory_space<vmem>>, vector<8x128xf32>,
    return
  }
  func.func @transform_0(%arg0: i32) -> (i32, i32) {
    %c0_i32 = arith.constant 0 : i32
    %c0_i32_0 = arith.constant 0 : i32
    return %arg0, %c0_i32 : i32, i32
  }
  func.func @transform_1(%arg0: i32) -> (i32, i32) {
    %c0_i32 = arith.constant 0 : i32
    %c0_i32_0 = arith.constant 0 : i32
    return %arg0, %c0_i32 : i32, i32
  }
  func.func @transform_2(%arg0: i32) -> (i32, i32) {
    %c0_i32 = arith.constant 0 : i32
    %c0_i32_0 = arith.constant 0 : i32
    %c0_i32_1 = arith.constant 0 : i32
    return %c0_i32, %c0_i32_0 : i32, i32
  }
  func.func @transform_3(%arg0: i32) -> (i32, i32) {
    %c0_i32 = arith.constant 0 : i32
    %c0_i32_0 = arith.constant 0 : i32
    %c0_i32_1 = arith.constant 0 : i32
    return %c0_i32, %c0_i32_0 : i32, i32
  }
  func.func @transform_4(%arg0: i32) -> (i32, i32) {
    %c0_i32 = arith.constant 0 : i32
    %c0_i32_0 = arith.constant 0 : i32
    %c0_i32_1 = arith.constant 0 : i32
    return %c0_i32, %c0_i32_0 : i32, i32
  }
  func.func @transform_5(%arg0: i32) -> (i32, i32) {
    %c0_i32 = arith.constant 0 : i32
    %c0_i32_0 = arith.constant 0 : i32
    %c0_i32_1 = arith.constant 0 : i32
    return %c0_i32, %c0_i32_0 : i32, i32
  }
  func.func @transform_6(%arg0: i32) -> (i32, i32) {
    %c0_i32 = arith.constant 0 : i32
    %c0_i32_0 = arith.constant 0 : i32
    %c0_i32_1 = arith.constant 0 : i32
    return %c0_i32, %c0_i32_0 : i32, i32
  }
  func.func @transform_7(%arg0: i32) -> (i32, i32) {
    %c0_i32 = arith.constant 0 : i32
    %c0_i32_0 = arith.constant 0 : i32
    %c0_i32_1 = arith.constant 0 : i32
    return %c0_i32, %c0_i32_0 : i32, i32
  }
  func.func @transform_8(%arg0: i32) -> (i32, i32) {
    %c0_i32 = arith.constant 0 : i32
    %c0_i32_0 = arith.constant 0 : i32
    %c0_i32_1 = arith.constant 0 : i32
    return %c0_i32, %c0_i32_0 : i32, i32
  }
  func.func @transform_9(%arg0: i32) -> (i32, i32) {
    %c0_i32 = arith.constant 0 : i32
    %c0_i32_0 = arith.constant 0 : i32
    %c0_i32_1 = arith.constant 0 : i32
    return %c0_i32, %c0_i32_0 : i32, i32
  }
  func.func @transform_10(%arg0: i32) -> (i32, i32) {
    %c0_i32 = arith.constant 0 : i32
    %c0_i32_0 = arith.constant 0 : i32
    return %arg0, %c0_i32 : i32, i32
  }
}

</mosaic_0001>

<llo_original>
// kernel: tpu_custom_call.1
$region0: #{tpu_custom_call.1}
  #allocation0 [shape = 'u32[]', space=smem, size = 0x4, offset = 0x4, fixed_abs, tag = 'smem constant byte address 0x4 - core index']
  #allocation1 [shape = 'u32[72,128]{1,0:T(1,128)}', space=vmem, size = 0x9000, scoped, tag = 'internal scratch']
  %s0 = inlined_call_operand.vmem [shape: f32[24,16], index: 0, kind: input, shape index: {}]
  %s1 = inlined_call_operand.vmem [shape: f32[24,4], index: 1, kind: input, shape index: {}]
  %s2 = inlined_call_operand.hbm [shape: f32[1,4], index: 2, kind: input, shape index: {}]
  %s3 = inlined_call_operand.hbm [shape: bf16[16,64], index: 3, kind: input, shape index: {}]
  %s4 = inlined_call_operand.hbm [shape: f32[1,64], index: 4, kind: input, shape index: {}]
  %s5 = inlined_call_operand.vmem [shape: bf16[64,64], index: 5, kind: input, shape index: {}]
  %s6 = inlined_call_operand.vmem [shape: f32[1,64], index: 6, kind: input, shape index: {}]
  %s7 = inlined_call_operand.vmem [shape: bf16[64,128], index: 7, kind: input, shape index: {}]
  %s8 = inlined_call_operand.vmem [shape: f32[1,128], index: 8, kind: input, shape index: {}]
  %s9 = inlined_call_operand.vmem [shape: f32[4,128], index: 9, kind: input, shape index: {}]
  %s10 = inlined_call_operand.hbm [shape: f32[24,128], index: 10, kind: output, shape index: {}]
  %s11 = sld [smem:[#allocation0]]
  $region85: #{tpu_custom_call.1} parent=0
    _
  %s13 = ssub.s32 1, %s11
  %s14 = scalar_select 0, %s13, %s11
  $region1: #{tpu_custom_call.1} parent=0
    #allocation2 [shape = 'u8[512]{0}', space=vmem, size = 0x400, scoped, tag = 'input window, operand 2, single buffered']
    #allocation3 [shape = 's32[2]{0}', space=sflag, size = 0x8, scoped, tag = 'scoped memory for tpu_custom_call.1']
    #allocation4 [shape = 's32[2]{0}', space=sflag, size = 0x8, scoped, tag = 'scoped memory for tpu_custom_call.1']
    #allocation5 [shape = 'u8[4096]{0}', space=vmem, size = 0x1000, scoped, tag = 'input window, operand 3, single buffered']
    #allocation6 [shape = 's32[1]{0}', space=sflag, size = 0x4, scoped, tag = 'scoped memory for tpu_custom_call.1']
    #allocation7 [shape = 'u8[512]{0}', space=vmem, size = 0x400, scoped, tag = 'input window, operand 4, single buffered']
    #allocation8 [shape = 'u8[8192]{0}', space=vmem, size = 0x2000, scoped, tag = 'output window, operand 0']
    %15 = vsyncpa [#allocation3], 0
    %16 = vsyncpa [#allocation6], 0
    %17 = vsyncpa [#allocation4], 0
    %s18 = scalar_lea.sflag [#allocation4], 1
    %19 = vsyncpa %s18, 0
    loop: start=0, step=1, limit=5
    $region2: #{tpu_custom_call.1} parent=1 // loop_pre_header
      _
    $region3: #{tpu_custom_call.1} parent=1 // loop_header
      %s21 = sphi 0, %s25
      %p22 = scmp.ge.s32.totalorder %s21, 5
      %s31 = sphi 0, %s33
      %s34 = sphi 0, %s31
      %s35 = sphi 0, %s34
      %s51 = sphi 0, %s35
      %s57 = sphi 0, %s59
      %s60 = sphi 0, %s57
      %s61 = sphi 0, %s60
      %s77 = sphi 0, %s61
      %s81 = sphi 0, %s81
      %s83 = sphi 0, %s81
      %s84 = sphi 0, %s83
      %s98 = sphi 0, %s84
      %s102 = sphi 0, %s102
      %s104 = sphi 0, %s102
      %s105 = sphi 0, %s104
      %s119 = sphi 0, %s105
      %s123 = sphi 0, %s123
      %s125 = sphi 0, %s123
      %s126 = sphi 0, %s125
      %s140 = sphi 0, %s126
      %s144 = sphi 0, %s144
      %s146 = sphi 0, %s144
      %s147 = sphi 0, %s146
      %s161 = sphi 0, %s147
      %s165 = sphi 0, %s165
      %s167 = sphi 0, %s165
      %s168 = sphi 0, %s167
      %s182 = sphi 0, %s168
      %s186 = sphi 0, %s186
      %s188 = sphi 0, %s186
      %s189 = sphi 0, %s188
      %s203 = sphi 0, %s189
      %s207 = sphi 0, %s207
      %s209 = sphi 0, %s207
      %s210 = sphi 0, %s209
      %s224 = sphi 0, %s210
      %s228 = sphi 0, %s228
      %s230 = sphi 0, %s228
      %s231 = sphi 0, %s230
      %s245 = sphi 0, %s231
      %s251 = sphi 0, %s253
      %s254 = sphi 0, %s251
      %s255 = sphi 0, %s254
      %s271 = sphi 0, %s255
    $region4: #{tpu_custom_call.1} parent=1 // loop_header_branch
      %24 = sbr.rel (%p22) target = $region8
    $region5: #{tpu_custom_call.1} parent=1 // loop_body
      %s26 = ssub.s32 %s21, 1
      %s27 = ssub.s32 %s21, 2
      %s28 = sadd.s32 %s21, 1
      %s29 = ssub.s32 %s21, %s28
      %p30 = scmp.eq.s32.totalorder %s29, 0
      %s32 = sadd.s32 %s31, 1
      %s33 = scalar_select %p30, %s31, %s32
      %p36 = pneg %p30
      %p37 = scmp.eq.s32.totalorder %s21, 2
      %p38 = por %p36, %p37
      %p39 = scmp.ne.s32.totalorder %s31, %s34
      %p40 = scmp.eq.s32.totalorder %s21, 0
      %p41 = por %p39, %p40
      %p42 = scmp.ne.s32.totalorder %s31, %s34
      %p43 = scmp.eq.s32.totalorder %s26, 2
      %p44 = por %p42, %p43
      %p45 = scmp.ne.s32.totalorder %s34, %s35
      %p46 = scmp.eq.s32.totalorder %s26, 0
      %p47 = por %p45, %p46
      %p48 = scmp.ne.s32.totalorder %s34, %s35
      %p49 = scmp.eq.s32.totalorder %s27, 2
      %p50 = por %p48, %p49
      %p52 = scmp.ne.s32.totalorder %s35, %s51
      %p53 = scmp.eq.s32.totalorder %s27, 0
      %p54 = por %p52, %p53
      %s55 = ssub.s32 %s21, %s28
      %p56 = scmp.eq.s32.totalorder %s55, 0
      %s58 = sadd.s32 %s57, 1
      %s59 = scalar_select %p56, %s57, %s58
      %p62 = pneg %p56
      %p63 = scmp.eq.s32.totalorder %s21, 2
      %p64 = por %p62, %p63
      %p65 = scmp.ne.s32.totalorder %s57, %s60
      %p66 = scmp.eq.s32.totalorder %s21, 0
      %p67 = por %p65, %p66
      %p68 = scmp.ne.s32.totalorder %s57, %s60
      %p69 = scmp.eq.s32.totalorder %s26, 2
      %p70 = por %p68, %p69
      %p71 = scmp.ne.s32.totalorder %s60, %s61
      %p72 = scmp.eq.s32.totalorder %s26, 0
      %p73 = por %p71, %p72
      %p74 = scmp.ne.s32.totalorder %s60, %s61
      %p75 = scmp.eq.s32.totalorder %s27, 2
      %p76 = por %p74, %p75
      %p78 = scmp.ne.s32.totalorder %s61, %s77
      %p79 = scmp.eq.s32.totalorder %s27, 0
      %p80 = por %p78, %p79
      %s82 = sadd.s32 %s81, 1
      %p85 = scmp.eq.s32.totalorder %s21, 2
      %p86 = scmp.ne.s32.totalorder %s81, %s83
      %p87 = scmp.eq.s32.totalorder %s21, 0
      %p88 = por %p86, %p87
      %p89 = scmp.ne.s32.totalorder %s81, %s83
      %p90 = scmp.eq.s32.totalorder %s26, 2
      %p91 = por %p89, %p90
      %p92 = scmp.ne.s32.totalorder %s83, %s84
      %p93 = scmp.eq.s32.totalorder %s26, 0
      %p94 = por %p92, %p93
      %p95 = scmp.ne.s32.totalorder %s83, %s84
      %p96 = scmp.eq.s32.totalorder %s27, 2
      %p97 = por %p95, %p96
      %p99 = scmp.ne.s32.totalorder %s84, %s98
      %p100 = scmp.eq.s32.totalorder %s27, 0
      %p101 = por %p99, %p100
      %s103 = sadd.s32 %s102, 1
      %p106 = scmp.eq.s32.totalorder %s21, 2
      %p107 = scmp.ne.s32.totalorder %s102, %s104
      %p108 = scmp.eq.s32.totalorder %s21, 0
      %p109 = por %p107, %p108
      %p110 = scmp.ne.s32.totalorder %s102, %s104
      %p111 = scmp.eq.s32.totalorder %s26, 2
      %p112 = por %p110, %p111
      %p113 = scmp.ne.s32.totalorder %s104, %s105
      %p114 = scmp.eq.s32.totalorder %s26, 0
      %p115 = por %p113, %p114
      %p116 = scmp.ne.s32.totalorder %s104, %s105
      %p117 = scmp.eq.s32.totalorder %s27, 2
      %p118 = por %p116, %p117
      %p120 = scmp.ne.s32.totalorder %s105, %s119
      %p121 = scmp.eq.s32.totalorder %s27, 0
      %p122 = por %p120, %p121
      %s124 = sadd.s32 %s123, 1
      %p127 = scmp.eq.s32.totalorder %s21, 2
      %p128 = scmp.ne.s32.totalorder %s123, %s125
      %p129 = scmp.eq.s32.totalorder %s21, 0
      %p130 = por %p128, %p129
      %p131 = scmp.ne.s32.totalorder %s123, %s125
      %p132 = scmp.eq.s32.totalorder %s26, 2
      %p133 = por %p131, %p132
      %p134 = scmp.ne.s32.totalorder %s125, %s126
      %p135 = scmp.eq.s32.totalorder %s26, 0
      %p136 = por %p134, %p135
      %p137 = scmp.ne.s32.totalorder %s125, %s126
      %p138 = scmp.eq.s32.totalorder %s27, 2
      %p139 = por %p137, %p138
      %p141 = scmp.ne.s32.totalorder %s126, %s140
      %p142 = scmp.eq.s32.totalorder %s27, 0
      %p143 = por %p141, %p142
      %s145 = sadd.s32 %s144, 1
      %p148 = scmp.eq.s32.totalorder %s21, 2
      %p149 = scmp.ne.s32.totalorder %s144, %s146
      %p150 = scmp.eq.s32.totalorder %s21, 0
      %p151 = por %p149, %p150
      %p152 = scmp.ne.s32.totalorder %s144, %s146
      %p153 = scmp.eq.s32.totalorder %s26, 2
      %p154 = por %p152, %p153
      %p155 = scmp.ne.s32.totalorder %s146, %s147
      %p156 = scmp.eq.s32.totalorder %s26, 0
      %p157 = por %p155, %p156
      %p158 = scmp.ne.s32.totalorder %s146, %s147
      %p159 = scmp.eq.s32.totalorder %s27, 2
      %p160 = por %p158, %p159
      %p162 = scmp.ne.s32.totalorder %s147, %s161
      %p163 = scmp.eq.s32.totalorder %s27, 0
      %p164 = por %p162, %p163
      %s166 = sadd.s32 %s165, 1
      %p169 = scmp.eq.s32.totalorder %s21, 2
      %p170 = scmp.ne.s32.totalorder %s165, %s167
      %p171 = scmp.eq.s32.totalorder %s21, 0
      %p172 = por %p170, %p171
      %p173 = scmp.ne.s32.totalorder %s165, %s167
      %p174 = scmp.eq.s32.totalorder %s26, 2
      %p175 = por %p173, %p174
      %p176 = scmp.ne.s32.totalorder %s167, %s168
      %p177 = scmp.eq.s32.totalorder %s26, 0
      %p178 = por %p176, %p177
      %p179 = scmp.ne.s32.totalorder %s167, %s168
      %p180 = scmp.eq.s32.totalorder %s27, 2
      %p181 = por %p179, %p180
      %p183 = scmp.ne.s32.totalorder %s168, %s182
      %p184 = scmp.eq.s32.totalorder %s27, 0
      %p185 = por %p183, %p184
      %s187 = sadd.s32 %s186, 1
      %p190 = scmp.eq.s32.totalorder %s21, 2
      %p191 = scmp.ne.s32.totalorder %s186, %s188
      %p192 = scmp.eq.s32.totalorder %s21, 0
      %p193 = por %p191, %p192
      %p194 = scmp.ne.s32.totalorder %s186, %s188
      %p195 = scmp.eq.s32.totalorder %s26, 2
      %p196 = por %p194, %p195
      %p197 = scmp.ne.s32.totalorder %s188, %s189
      %p198 = scmp.eq.s32.totalorder %s26, 0
      %p199 = por %p197, %p198
      %p200 = scmp.ne.s32.totalorder %s188, %s189
      %p201 = scmp.eq.s32.totalorder %s27, 2
      %p202 = por %p200, %p201
      %p204 = scmp.ne.s32.totalorder %s189, %s203
      %p205 = scmp.eq.s32.totalorder %s27, 0
      %p206 = por %p204, %p205
      %s208 = sadd.s32 %s207, 1
      %p211 = scmp.eq.s32.totalorder %s21, 2
      %p212 = scmp.ne.s32.totalorder %s207, %s209
      %p213 = scmp.eq.s32.totalorder %s21, 0
      %p214 = por %p212, %p213
      %p215 = scmp.ne.s32.totalorder %s207, %s209
      %p216 = scmp.eq.s32.totalorder %s26, 2
      %p217 = por %p215, %p216
      %p218 = scmp.ne.s32.totalorder %s209, %s210
      %p219 = scmp.eq.s32.totalorder %s26, 0
      %p220 = por %p218, %p219
      %p221 = scmp.ne.s32.totalorder %s209, %s210
      %p222 = scmp.eq.s32.totalorder %s27, 2
      %p223 = por %p221, %p222
      %p225 = scmp.ne.s32.totalorder %s210, %s224
      %p226 = scmp.eq.s32.totalorder %s27, 0
      %p227 = por %p225, %p226
      %s229 = sadd.s32 %s228, 1
      %p232 = scmp.eq.s32.totalorder %s21, 2
      %p233 = scmp.ne.s32.totalorder %s228, %s230
      %p234 = scmp.eq.s32.totalorder %s21, 0
      %p235 = por %p233, %p234
      %p236 = scmp.ne.s32.totalorder %s228, %s230
      %p237 = scmp.eq.s32.totalorder %s26, 2
      %p238 = por %p236, %p237
      %p239 = scmp.ne.s32.totalorder %s230, %s231
      %p240 = scmp.eq.s32.totalorder %s26, 0
      %p241 = por %p239, %p240
      %p242 = scmp.ne.s32.totalorder %s230, %s231
      %p243 = scmp.eq.s32.totalorder %s27, 2
      %p244 = por %p242, %p243
      %p246 = scmp.ne.s32.totalorder %s231, %s245
      %p247 = scmp.eq.s32.totalorder %s27, 0
      %p248 = por %p246, %p247
      %s249 = ssub.s32 %s21, %s28
      %p250 = scmp.eq.s32.totalorder %s249, 0
      %s252 = sadd.s32 %s251, 1
      %s253 = scalar_select %p250, %s251, %s252
      %p256 = pneg %p250
      %p257 = scmp.eq.s32.totalorder %s21, 2
      %p258 = por %p256, %p257
      %p259 = scmp.ne.s32.totalorder %s251, %s254
      %p260 = scmp.eq.s32.totalorder %s21, 0
      %p261 = por %p259, %p260
      %p262 = scmp.ne.s32.totalorder %s251, %s254
      %p263 = scmp.eq.s32.totalorder %s26, 2
      %p264 = por %p262, %p263
      %p265 = scmp.ne.s32.totalorder %s254, %s255
      %p266 = scmp.eq.s32.totalorder %s26, 0
      %p267 = por %p265, %p266
      %p268 = scmp.ne.s32.totalorder %s254, %s255
      %p269 = scmp.eq.s32.totalorder %s27, 2
      %p270 = por %p268, %p269
      %p272 = scmp.ne.s32.totalorder %s255, %s271
      %p273 = scmp.eq.s32.totalorder %s27, 0
      %p274 = por %p272, %p273
      %p275 = scmp.le.s32.totalorder 1, %s21
      %p276 = scmp.lt.s32.totalorder %s21, 4
      %p277 = pnand %p275, %p276
      %p278 = pneg %p277
      // Predicated region
      $region9: #{tpu_custom_call.1} parent=5 // pred_check
        _
      $region10: #{tpu_custom_call.1} parent=5 // pred_check_branch
        %280 = sbr.rel (%p277) target = $region12
      $region11: #{tpu_custom_call.1} parent=5 // pred_region
        %s281 = ssub.s32 %s21, 1
        // Predicated region
        $region13: #{tpu_custom_call.1} parent=11 // pred_check
          %p282 = pneg %p94
        $region14: #{tpu_custom_call.1} parent=11 // pred_check_branch
          %284 = sbr.rel (%p282) target = $region16
        $region15: #{tpu_custom_call.1} parent=11 // pred_region
          %286 = vsyncadd [#allocation3], 0
          %s288 = sshll.u32 %s2, 4
          %s289 = int_to_ptr.hbm [resolvable:$true] %s288
          %s290 = sshll.u32 [#allocation2], 4
          %s291 = int_to_ptr.vmem [resolvable:$true] %s290
          %293 = dma.hbm_to_vmem [thread:$0]  %s289, 16, %s291, [#allocation3]
        $region16: #{tpu_custom_call.1} parent=11 // pred_fallthru
          _
        // Predicated region
        $region17: #{tpu_custom_call.1} parent=11 // pred_check
          %p294 = pneg %p115
        $region18: #{tpu_custom_call.1} parent=11 // pred_check_branch
          %296 = sbr.rel (%p294) target = $region20
        $region19: #{tpu_custom_call.1} parent=11 // pred_region
          %298 = vsyncadd [#allocation6], 0
          %s299 = sshll.u32 %s3, 4
          %s300 = int_to_ptr.hbm [resolvable:$true] %s299
          %s301 = sshll.u32 [#allocation5], 4
          %s302 = int_to_ptr.vmem [resolvable:$true] %s301
          %307 = dma.hbm_to_vmem [thread:$0]  %s300, 128, %s302, [#allocation6], 64, 64, 4
        $region20: #{tpu_custom_call.1} parent=11 // pred_fallthru
          _
        // Predicated region
        $region21: #{tpu_custom_call.1} parent=11 // pred_check
          %p308 = pneg %p136
        $region22: #{tpu_custom_call.1} parent=11 // pred_check_branch
          %310 = sbr.rel (%p308) target = $region24
        $region23: #{tpu_custom_call.1} parent=11 // pred_region
          %312 = vsyncadd [#allocation6], 0
          %s314 = sshll.u32 %s4, 4
          %s315 = int_to_ptr.hbm [resolvable:$true] %s314
          %s316 = sshll.u32 [#allocation7], 4
          %s317 = int_to_ptr.vmem [resolvable:$true] %s316
          %319 = dma.hbm_to_vmem [thread:$0]  %s315, 16, %s317, [#allocation6]
        $region24: #{tpu_custom_call.1} parent=11 // pred_fallthru
          _
        // Predicated region
        $region25: #{tpu_custom_call.1} parent=11 // pred_check
          %p320 = pneg %p157
        $region26: #{tpu_custom_call.1} parent=11 // pred_check_branch
          %322 = sbr.rel (%p320) target = $region28
        $region27: #{tpu_custom_call.1} parent=11 // pred_region
          _
        $region28: #{tpu_custom_call.1} parent=11 // pred_fallthru
          _
        // Predicated region
        $region29: #{tpu_custom_call.1} parent=11 // pred_check
          %p323 = pneg %p178
        $region30: #{tpu_custom_call.1} parent=11 // pred_check_branch
          %325 = sbr.rel (%p323) target = $region32
        $region31: #{tpu_custom_call.1} parent=11 // pred_region
          _
        $region32: #{tpu_custom_call.1} parent=11 // pred_fallthru
          _
        // Predicated region
        $region33: #{tpu_custom_call.1} parent=11 // pred_check
          %p326 = pneg %p199
        $region34: #{tpu_custom_call.1} parent=11 // pred_check_branch
          %328 = sbr.rel (%p326) target = $region36
        $region35: #{tpu_custom_call.1} parent=11 // pred_region
          _
        $region36: #{tpu_custom_call.1} parent=11 // pred_fallthru
          _
        // Predicated region
        $region37: #{tpu_custom_call.1} parent=11 // pred_check
          %p329 = pneg %p220
        $region38: #{tpu_custom_call.1} parent=11 // pred_check_branch
          %331 = sbr.rel (%p329) target = $region40
        $region39: #{tpu_custom_call.1} parent=11 // pred_region
          _
        $region40: #{tpu_custom_call.1} parent=11 // pred_fallthru
          _
        // Predicated region
        $region41: #{tpu_custom_call.1} parent=11 // pred_check
          %p332 = pneg %p241
        $region42: #{tpu_custom_call.1} parent=11 // pred_check_branch
          %334 = sbr.rel (%p332) target = $region44
        $region43: #{tpu_custom_call.1} parent=11 // pred_region
          _
        $region44: #{tpu_custom_call.1} parent=11 // pred_fallthru
          _
      $region12: #{tpu_custom_call.1} parent=5 // pred_fallthru
        _
      %p335 = scmp.lt.s32.totalorder %s21, 3
      // Predicated region
      $region45: #{tpu_custom_call.1} parent=5 // pred_check
        %p336 = pneg %p335
      $region46: #{tpu_custom_call.1} parent=5 // pred_check_branch
        %338 = sbr.rel (%p336) target = $region48
      $region47: #{tpu_custom_call.1} parent=5 // pred_region
        // Predicated region
        $region49: #{tpu_custom_call.1} parent=47 // pred_check
          %p339 = pneg %p41
        $region50: #{tpu_custom_call.1} parent=47 // pred_check_branch
          %341 = sbr.rel (%p339) target = $region52
        $region51: #{tpu_custom_call.1} parent=47 // pred_region
          %p342 = scmp.lt.s32.totalorder %s21, 2
          %s343 = scalar_select %p342, %s21, 2
          %s344 = smul.addr %s343, 8
          %s345 = scalar_lea.vmem %s0, %s344
        $region52: #{tpu_custom_call.1} parent=47 // pred_fallthru
          _
        // Predicated region
        $region53: #{tpu_custom_call.1} parent=47 // pred_check
          %p346 = pneg %p67
        $region54: #{tpu_custom_call.1} parent=47 // pred_check_branch
          %348 = sbr.rel (%p346) target = $region56
        $region55: #{tpu_custom_call.1} parent=47 // pred_region
          %p349 = scmp.lt.s32.totalorder %s21, 2
          %s350 = scalar_select %p349, %s21, 2
          %s351 = smul.addr %s350, 8
          %s352 = scalar_lea.vmem %s1, %s351
        $region56: #{tpu_custom_call.1} parent=47 // pred_fallthru
          _
      $region48: #{tpu_custom_call.1} parent=5 // pred_fallthru
        _
      %p353 = scmp.le.s32.totalorder 1, %s21
      %p354 = scmp.lt.s32.totalorder %s21, 4
      %p355 = pnand %p353, %p354
      %p356 = pneg %p355
      // Predicated region
      $region57: #{tpu_custom_call.1} parent=5 // pred_check
        _
      $region58: #{tpu_custom_call.1} parent=5 // pred_check_branch
        %358 = sbr.rel (%p355) target = $region60
      $region59: #{tpu_custom_call.1} parent=5 // pred_region
        %s359 = ssub.s32 %s21, 1
        // Predicated region
        $region61: #{tpu_custom_call.1} parent=59 // pred_check
          %p360 = pneg %p94
        $region62: #{tpu_custom_call.1} parent=59 // pred_check_branch
          %362 = sbr.rel (%p360) target = $region64
        $region63: #{tpu_custom_call.1} parent=59 // pred_region
          %364 = dma.done [#allocation3], 16
        $region64: #{tpu_custom_call.1} parent=59 // pred_fallthru
          _
        // Predicated region
        $region65: #{tpu_custom_call.1} parent=59 // pred_check
          %p365 = pneg %p115
        $region66: #{tpu_custom_call.1} parent=59 // pred_check_branch
          %367 = sbr.rel (%p365) target = $region68
        $region67: #{tpu_custom_call.1} parent=59 // pred_region
          %369 = dma.done [#allocation6], 128
        $region68: #{tpu_custom_call.1} parent=59 // pred_fallthru
          _
        // Predicated region
        $region69: #{tpu_custom_call.1} parent=59 // pred_check
          %p370 = pneg %p136
        $region70: #{tpu_custom_call.1} parent=59 // pred_check_branch
          %372 = sbr.rel (%p370) target = $region72
        $region71: #{tpu_custom_call.1} parent=59 // pred_region
          %374 = dma.done [#allocation6], 16
        $region72: #{tpu_custom_call.1} parent=59 // pred_fallthru
          _
        %p375 = scmp.lt.s32.totalorder %s26, 2
        %s376 = scalar_select %p375, %s26, 2
        %s377 = smul.addr %s376, 8
        %s378 = scalar_lea.vmem %s0, %s377
        %p379 = pneg %p47
        %p380 = pneg %p44
        %p381 = scmp.lt.s32.totalorder %s26, 2
        %s382 = scalar_select %p381, %s26, 2
        %s383 = smul.addr %s382, 8
        %s384 = scalar_lea.vmem %s1, %s383
        %p385 = pneg %p73
        %p386 = pneg %p70
        %p387 = pneg %p94
        %p388 = pneg %p91
        %p389 = pneg %p115
        %p390 = pneg %p112
        %p391 = pneg %p136
        %p392 = pneg %p133
        %p393 = pneg %p157
        %p394 = pneg %p154
        %p395 = pneg %p178
        %p396 = pneg %p175
        %p397 = pneg %p199
        %p398 = pneg %p196
        %p399 = pneg %p220
        %p400 = pneg %p217
        %p401 = pneg %p241
        %p402 = pneg %p238
        %p403 = pneg %p267
        %p404 = pneg %p264
        %s405 = sand.u32 %s254, 1
        %s406 = scalar_lea.sflag [#allocation4], %s405
        %s407 = sand.u32 %s254, 1
        %s408 = smul.addr %s407, 8
        %s409 = scalar_lea.vmem [#allocation8], %s408
        %p410 = scmp.lt.s32.totalorder %s26, 2
        %s411 = scalar_select %p410, %s26, 2
        %s412 = smul.addr %s411, 8
        %s413 = scalar_lea.vmem %s0, %s412
        %p414 = scmp.lt.s32.totalorder %s26, 2
        %s415 = scalar_select %p414, %s26, 2
        %s416 = smul.addr %s415, 8
        %s417 = scalar_lea.vmem %s1, %s416
        %v419 = vld [vmem:[%s413] sm:$0xff]
        %v420 = vpack.c.bf16 %v419, %v419
        %v421 = vld [vmem:[#allocation5] sm:$0xf]
        %v422 = vld [vmem:[#allocation5 + $0x4] sm:$0xf]
        %v423 = vld [vmem:[#allocation7] sm:$0x1]
        %v425 = vperm.slane %v423, 0
        %v429 = vunpack.c.l.b16 %v421
        %v430 = vunpack.c.l.b16 %v422
        %v431 = vpack.c.b16 %v430, %v429
        %vm433 = vcmask 130048
        %v435 = vsel %vm433, %v420, 0
        %437 = vmatpush.bf16.msra.mxu0 0
        %438 = vmatpush.bf16.msra.mxu0 0
        %439 = vmatpush.bf16.msra.mxu0 0
        %440 = vmatpush.bf16.msra.mxu0 0
        %441 = vmatpush.bf16.msra.mxu0 0
        %442 = vmatpush.bf16.msra.mxu0 0
        %443 = vmatpush.bf16.msra.mxu0 0
        %444 = vmatpush.bf16.msra.mxu0 %v431
        %445 = vmatmul.bf16.gmra.mxu0 %v435
        %v446 = vpop.f32.mrf.mxu0
        %v447 = vadd.f32 %v425, %v446
        %v448 = vpop.f32.mrf.mxu0
        %449 = vdwg.mxu0
        %v450 = vtanh.pop %v447
        %v451 = vpack.c.bf16 %v450, %v450
        %v452 = vld [vmem:[%s5] sm:$0xf]
        %v453 = vld [vmem:[%s5 + $0x4] sm:$0xf]
        %v454 = vld [vmem:[%s5 + $0x8] sm:$0xf]
        %v455 = vld [vmem:[%s5 + $0xc] sm:$0xf]
        %v456 = vld [vmem:[%s5 + $0x10] sm:$0xf]
        %v457 = vld [vmem:[%s5 + $0x14] sm:$0xf]
        %v458 = vld [vmem:[%s5 + $0x18] sm:$0xf]
        %v459 = vld [vmem:[%s5 + $0x1c] sm:$0xf]
        %v460 = vld [vmem:[%s6] sm:$0x1]
        %v462 = vperm.slane %v460, 0
        %v472 = vunpack.c.l.b16 %v452
        %v473 = vunpack.c.l.b16 %v453
        %v474 = vunpack.c.l.b16 %v454
        %v475 = vunpack.c.l.b16 %v455
        %v476 = vunpack.c.l.b16 %v456
        %v477 = vunpack.c.l.b16 %v457
        %v478 = vunpack.c.l.b16 %v458
        %v479 = vunpack.c.l.b16 %v459
        %v480 = vpack.c.b16 %v473, %v472
        %v481 = vpack.c.b16 %v475, %v474
        %v482 = vpack.c.b16 %v477, %v476
        %v483 = vpack.c.b16 %v479, %v478
        %vm488 = vcmask 523264
        %v490 = vsel %vm488, %v451, 0
        %492 = vmatpush.bf16.msra.mxu0 0
        %493 = vmatpush.bf16.msra.mxu0 0
        %494 = vmatpush.bf16.msra.mxu0 0
        %495 = vmatpush.bf16.msra.mxu0 0
        %496 = vmatpush.bf16.msra.mxu0 %v483
        %497 = vmatpush.bf16.msra.mxu0 %v482
        %498 = vmatpush.bf16.msra.mxu0 %v481
        %499 = vmatpush.bf16.msra.mxu0 %v480
        %500 = vmatmul.bf16.gmra.mxu0 %v490
        %v501 = vpop.f32.mrf.mxu0
        %v502 = vadd.f32 %v462, %v501
        %v503 = vpop.f32.mrf.mxu0
        %504 = vdwg.mxu0
        %v505 = vtanh.pop %v502
        %v506 = vpack.c.bf16 %v505, %v505
        %v507 = vld [vmem:[%s7] sm:$0xf]
        %v508 = vld [vmem:[%s7 + $0x4] sm:$0xf]
        %v509 = vld [vmem:[%s7 + $0x8] sm:$0xf]
        %v510 = vld [vmem:[%s7 + $0xc] sm:$0xf]
        %v511 = vld [vmem:[%s7 + $0x10] sm:$0xf]
        %v512 = vld [vmem:[%s7 + $0x14] sm:$0xf]
        %v513 = vld [vmem:[%s7 + $0x18] sm:$0xf]
        %v514 = vld [vmem:[%s7 + $0x1c] sm:$0xf]
        %v515 = vld [vmem:[%s8] sm:$0x1]
        %v517 = vperm.slane %v515, 0
        %v527 = vunpack.c.l.b16 %v507
        %v528 = vunpack.c.l.b16 %v508
        %v529 = vunpack.c.l.b16 %v509
        %v530 = vunpack.c.l.b16 %v510
        %v531 = vunpack.c.l.b16 %v511
        %v532 = vunpack.c.l.b16 %v512
        %v533 = vunpack.c.l.b16 %v513
        %v534 = vunpack.c.l.b16 %v514
        %v535 = vpack.c.b16 %v528, %v527
        %v536 = vpack.c.b16 %v530, %v529
        %v537 = vpack.c.b16 %v532, %v531
        %v538 = vpack.c.b16 %v534, %v533
        %v544 = vsel %vm488, %v506, 0
        %546 = vmatpush.bf16.msra.mxu0 0
        %547 = vmatpush.bf16.msra.mxu0 0
        %548 = vmatpush.bf16.msra.mxu0 0
        %549 = vmatpush.bf16.msra.mxu0 0
        %550 = vmatpush.bf16.msra.mxu0 %v538
        %551 = vmatpush.bf16.msra.mxu0 %v537
        %552 = vmatpush.bf16.msra.mxu0 %v536
        %553 = vmatpush.bf16.msra.mxu0 %v535
        %554 = vmatmul.bf16.gmra.mxu0 %v544
        %v555 = vpop.f32.mrf.mxu0
        %v556 = vadd.f32 %v517, %v555
        %v557 = vpop.f32.mrf.mxu0
        %558 = vdwg.mxu0
        %v559 = vld [vmem:[#allocation2] sm:$0x1]
        %v560 = vmul.f32 %v559, 1.442695
        %v561 = vpow.pop %v560
        %v562 = vld [vmem:[%s417] sm:$0xff]
        %v564 = vperm.slane %v561, 0
        %v566 = vmul.f32 %v564, %v562
        %v567 = vld [vmem:[%s9] sm:$0xf]
        %vm568 = vcmask 31744
        %v570 = vsel %vm568, %v566, 0
        %vm572 = vcmask 1043456
        %v574 = vsel %vm572, %v567, 0
        %576 = vmatpush.msra.mxu0 0.0
        %577 = vmatpush.msra.mxu0 0.0
        %578 = vmatpush.msra.mxu0 0.0
        %579 = vmatpush.msra.mxu0 0.0
        %580 = vmatpush.msra.mxu0 0.0
        %581 = vmatpush.msra.mxu0 0.0
        %582 = vmatpush.msra.mxu0 0.0
        %583 = vmatpush.msra.mxu0 0.0
        %584 = vmatpush.msra.mxu0 0.0
        %585 = vmatpush.msra.mxu0 0.0
        %586 = vmatpush.msra.mxu0 0.0
        %587 = vmatpush.msra.mxu0 0.0
        %588 = vmatpush.msra.mxu0 0.0
        %589 = vmatpush.msra.mxu0 0.0
        %590 = vmatpush.msra.mxu0 0.0
        %591 = vmatpush.msra.mxu0 %v574
        %592 = vmatmul.f32.gmra.mxu0 %v570
        %v593 = vpop.f32.mrf.mxu0
        %v594 = vadd.f32 0.0, %v593
        %595 = vdwg.mxu0
        %v596 = vadd.f32 %v556, %v594
        %597 = vst [vmem:[%s409] sm:$0xff] %v596
        %s598 = sand.u32 %s254, 1
        %s599 = scalar_lea.sflag [#allocation4], %s598
        %s600 = sand.u32 %s254, 1
        %s601 = smul.addr %s600, 8
        %s602 = scalar_lea.vmem [#allocation8], %s601
        // Predicated region
        $region73: #{tpu_custom_call.1} parent=59 // pred_check
          %p603 = pneg %p264
        $region74: #{tpu_custom_call.1} parent=59 // pred_check_branch
          %605 = sbr.rel (%p603) target = $region76
        $region75: #{tpu_custom_call.1} parent=59 // pred_region
          %607 = vsyncadd %s599, 0
          %s608 = smul.addr %s26, 8
          %s609 = scalar_lea.hbm %s10, %s608
          %s611 = sshll.u32 %s602, 4
          %s612 = int_to_ptr.vmem [resolvable:$true] %s611
          %s613 = sshll.u32 %s609, 4
          %s614 = int_to_ptr.hbm [resolvable:$true] %s613
          %616 = dma.vmem_to_hbm [thread:$0]  %s612, 128, %s614, %s599
        $region76: #{tpu_custom_call.1} parent=59 // pred_fallthru
          _
      $region60: #{tpu_custom_call.1} parent=5 // pred_fallthru
        _
      %p617 = scmp.le.s32.totalorder 2, %s21
      // Predicated region
      $region77: #{tpu_custom_call.1} parent=5 // pred_check
        %p618 = pneg %p617
      $region78: #{tpu_custom_call.1} parent=5 // pred_check_branch
        %620 = sbr.rel (%p618) target = $region80
      $region79: #{tpu_custom_call.1} parent=5 // pred_region
        %s621 = ssub.s32 %s21, 2
        // Predicated region
        $region81: #{tpu_custom_call.1} parent=79 // pred_check
          %p622 = pneg %p270
        $region82: #{tpu_custom_call.1} parent=79 // pred_check_branch
          %624 = sbr.rel (%p622) target = $region84
        $region83: #{tpu_custom_call.1} parent=79 // pred_region
          %s625 = sand.u32 %s255, 1
          %s626 = scalar_lea.sflag [#allocation4], %s625
          %s627 = sand.u32 %s255, 1
          %s628 = smul.addr %s627, 8
          %s629 = scalar_lea.vmem [#allocation8], %s628
          %631 = dma.done %s626, 128
        $region84: #{tpu_custom_call.1} parent=79 // pred_fallthru
          _
      $region80: #{tpu_custom_call.1} parent=5 // pred_fallthru
        _
    $region6: #{tpu_custom_call.1} parent=1 // loop_footer
      %s25 = sadd.s32 1, %s21
    $region7: #{tpu_custom_call.1} parent=1 // loop_footer_branch
      %20 = sbr.rel target = $region3
    $region8: #{tpu_custom_call.1} parent=1 // loop_exit
      _
    %632 = vsyncpa [#allocation3], 1
    %s633 = scalar_lea.sflag [#allocation3], 1
    %634 = vsyncpa %s633, 1
    %635 = vsyncpa [#allocation6], 1
    %636 = vsyncpa [#allocation4], 1
    %s637 = scalar_lea.sflag [#allocation4], 1
    %638 = vsyncpa %s637, 1

</llo_original>
